<compile_context>
chip_gen: v6e
topology: v6e:2x2x1
jax: 0.10.0
libtpu: 0.0.40
codegen_flags: <defaults>
</compile_context>

<pallas_src>
import math
import jax
import jax.numpy as jnp
from jax.experimental import pallas as pl
from jax.experimental.pallas import tpu as pltpu


def _round_up(x, m):
    return ((x + m - 1) // m) * m


# ------------------------------ Pallas kernel ------------------------------ #

def _embed_gather_kernel(idx_ref, hi_ref, lo_ref, out_ref):
    """One grid step: gather a (tm, Dp) tile of embeddings via one-hot @ table.

    hi/lo are the bf16 hi/lo split of the f32 table.  The one-hot is exactly 0/1
    in bf16, each dot accumulates in f32 on the MXU, and hi + lo reconstructs the
    f32 table rows -- single-pass (DEFAULT precision) matmuls, no in-kernel
    f32->bf16 operand splitting on the VPU.
    """
    tm = idx_ref.shape[0]
    vp = hi_ref.shape[0]
    idx = idx_ref[...]                                               # (tm, 1) int32
    lane_ids = jax.lax.broadcasted_iota(jnp.int32, (tm, vp), 1)      # (tm, Vp)
    onehot = (lane_ids == idx).astype(jnp.bfloat16)                  # exact 0.0 / 1.0
    acc = jnp.dot(onehot, hi_ref[...], preferred_element_type=jnp.float32)
    acc = acc + jnp.dot(onehot, lo_ref[...], preferred_element_type=jnp.float32)
    out_ref[...] = acc.astype(out_ref.dtype)


# ------------------------------- JAX wrapper ------------------------------- #

def fixed_embedding_lookup(x, table, table_hi, table_lo, *, dim,
                           block_tokens=1024, out_dtype=jnp.float32,
                           min_pallas_tokens=512, force_pallas=False):
    """out[..., :] = table[x[...], :]   (equivalent to nn.Embedding lookup).

    `table` is the (V, D) f32 table (used by the tiny-input fast path);
    `table_hi` / `table_lo` are its precomputed bf16 hi/lo split, zero-padded to
    (Vp, Dp) with Vp, Dp multiples of 128 (lane-dense one-hot, unmasked stores).
    Indices are assumed to lie in [0, V); out-of-range rows come back as zeros.
    """
    lead_shape = x.shape
    flat = x.reshape(-1).astype(jnp.int32)
    n_tok = flat.shape[0]

    if n_tok == 0:                                   # zero-size-grid guard
        return jnp.zeros((*lead_shape, dim), out_dtype)

    # Tiny inputs: pallas_call dispatch + pipeline warmup dominates -> XLA gather wins.
    if (not force_pallas) and n_tok < min_pallas_tokens:
        out = jnp.take(table, flat, axis=0).astype(out_dtype)
        return jax.lax.stop_gradient(out.reshape(*lead_shape, dim))

    vp, dp = table_hi.shape

    # Tile size: large tiles amortize the ~0.35us/step overhead; when more than one
    # tile is needed, pick an even, balanced tile count so v7x's 2 TCs split evenly.
    n_pad8 = _round_up(n_tok, 8)
    if n_pad8 <= block_tokens:
        tm = n_pad8
    else:
        n_tiles = _round_up(pl.cdiv(n_pad8, block_tokens), 2)   # even #tiles (v7x 2 TCs)
        tm = _round_up(pl.cdiv(n_pad8, n_tiles), 8)
    grid = pl.cdiv(n_pad8, tm)
    n_pad = grid * tm          # adaptive padding: waste < 8 rows per tile (store-bound)

    flat = jnp.pad(flat, (0, n_pad - n_tok))         # padded rows gather row 0
    idx2d = flat.reshape(n_pad, 1)

    out_itemsize = jnp.dtype(out_dtype).itemsize
    cost = pl.CostEstimate(
        flops=2 * 2 * n_pad * vp * dp,               # two (tm,Vp)x(Vp,Dp) dots per tile
        transcendentals=0,
        bytes_accessed=n_pad * 4 + n_pad * dp * out_itemsize + 2 * vp * dp * 2,
    )

    out = pl.pallas_call(
        _embed_gather_kernel,
        out_shape=jax.ShapeDtypeStruct((n_pad, dp), out_dtype),
        grid_spec=pltpu.PrefetchScalarGridSpec(
            num_scalar_prefetch=0,
            grid=(grid,),
            in_specs=[
                pl.BlockSpec((tm, 1), lambda i: (i, 0)),     # token tile of indices
                pl.BlockSpec((vp, dp), lambda i: (0, 0)),    # hi table: VMEM-resident
                pl.BlockSpec((vp, dp), lambda i: (0, 0)),    # lo table: VMEM-resident
            ],
            out_specs=pl.BlockSpec((tm, dp), lambda i: (i, 0)),
        ),
        compiler_params=pltpu.CompilerParams(
            dimension_semantics=("parallel",),   # shard token tiles across v7x's 2 TCs
        ),
        cost_estimate=cost,
    )(idx2d, table_hi, table_lo)

    out = out[:n_tok, :dim].reshape(*lead_shape, dim)
    return jax.lax.stop_gradient(out)                # mirrors .detach()


def make_fixed_embedding_table(channels_in, dimension_model):
    # One-time __init__ work: sin/cos interleaved table, exactly as the PyTorch code.
    position = jnp.arange(channels_in, dtype=jnp.float32)[:, None]            # (V, 1)
    div_term = jnp.exp(jnp.arange(0, dimension_model, 2, dtype=jnp.float32)
                       * -(math.log(10000.0) / dimension_model))              # (D/2,)
    ang = position * div_term                                                  # (V, D/2)
    w = jnp.zeros((channels_in, dimension_model), jnp.float32)
    w = w.at[:, 0::2].set(jnp.sin(ang))
    w = w.at[:, 1::2].set(jnp.cos(ang))
    return w


class FixedEmbeddingPallas:
    def __init__(self, channels_in, dimension_model, *, block_tokens=1024,
                 out_dtype=jnp.float32, min_pallas_tokens=512):
        self.vocab = channels_in
        self.dim = dimension_model
        self.block_tokens = block_tokens
        self.out_dtype = out_dtype
        self.min_pallas_tokens = min_pallas_tokens

        self.table = make_fixed_embedding_table(channels_in, dimension_model)  # (V,D) f32

        # One-time padding + bf16 hi/lo split (kept out of the forward pass).
        vp = _round_up(channels_in, 128)        # lane-dense one-hot / MXU depth
        dp = _round_up(dimension_model, 128)    # lane-dense (unmasked) output stores
        tpad = jnp.zeros((vp, dp), jnp.float32)
        tpad = tpad.at[:channels_in, :dimension_model].set(self.table)
        self.table_hi = tpad.astype(jnp.bfloat16)
        self.table_lo = (tpad - self.table_hi.astype(jnp.float32)).astype(jnp.bfloat16)

    def __call__(self, x, *, force_pallas=False):
        return fixed_embedding_lookup(
            x, self.table, self.table_hi, self.table_lo, dim=self.dim,
            block_tokens=self.block_tokens, out_dtype=self.out_dtype,
            min_pallas_tokens=self.min_pallas_tokens, force_pallas=force_pallas)


if __name__ == "__main__":
    channels_in, dimension_model = 32, 128     # small vocab, lane-dense d_model
    batch, seq = 2, 8
    key = jax.random.PRNGKey(0)
    k1, k2 = jax.random.split(key)
    x = jax.random.randint(k1, (batch, seq), 0, channels_in, dtype=jnp.int32)

    emb = FixedEmbeddingPallas(channels_in, dimension_model)
    ref = emb.table[x.reshape(-1)].reshape(batch, seq, dimension_model)

    # 1) Module forward at the spec'd small shape (auto path: XLA-gather fast path).
    out = jax.block_until_ready(emb(x))
    assert out.shape == (batch, seq, dimension_model) and out.dtype == jnp.float32
    err_auto = float(jnp.max(jnp.abs(out - ref)))
    assert err_auto < 1e-3, f"auto-path max abs err {err_auto}"

    # 2) Force the Pallas kernel on the same small input (single-tile grid).
    out_k = jax.block_until_ready(emb(x, force_pallas=True))
    assert out_k.shape == (batch, seq, dimension_model) and out_k.dtype == jnp.float32
    assert bool(jnp.all(jnp.isfinite(out_k)))
    err_small = float(jnp.max(jnp.abs(out_k - ref)))
    assert err_small < 1e-3, f"small-case max abs err {err_small}"

    # 3) Multi-tile grid (exercises the even, balanced tile split + bounded padding).
    x_big = jax.random.randint(k2, (2, 1001), 0, channels_in, dtype=jnp.int32)  # 2002 tok
    out_big = jax.block_until_ready(emb(x_big, force_pallas=True))
    ref_big = emb.table[x_big.reshape(-1)].reshape(2, 1001, dimension_model)
    err_big = float(jnp.max(jnp.abs(out_big - ref_big)))
    assert err_big < 1e-3, f"multi-tile max abs err {err_big}"

    print("KERNEL_OK")
</pallas_src>

<mosaic_0001>
module attributes {stable_mosaic.version = 11 : i64} {
  func.func @_embed_gather_kernel(%arg0: i32, %arg1: memref<16x1xi32, #tpu.memory_space<vmem>>, %arg2: memref<128x128xbf16, #tpu.memory_space<vmem>>, %arg3: memref<128x128xbf16, #tpu.memory_space<vmem>>, %arg4: memref<16x128xf32, #tpu.memory_space<vmem>>) attributes {dimension_semantics = [#tpu.dimension_semantics<parallel>], iteration_bounds = array<i64: 1>, scalar_prefetch = 0 : i64, scratch_operands = 0 : i64, tpu.core_type = #tpu.core_type<tc>, window_params = [{transform_indices = @transform_0, window_bounds = array<i64: 16, 1>}, {pipeline_mode = #tpu.pipeline_mode<synchronous>, transform_indices = @transform_1, window_bounds = array<i64: 128, 128>}, {pipeline_mode = #tpu.pipeline_mode<synchronous>, transform_indices = @transform_2, window_bounds = array<i64: 128, 128>}, {transform_indices = @transform_3, window_bounds = array<i64: 16, 128>}]} {
    %c0 = arith.constant 0 : index
    %c0_0 = arith.constant 0 : index
    %0 = vector.load %arg1[%c0, %c0_0] : memref<16x1xi32, #tpu.memory_space<vmem>>, vector<16x1xi32>
    %1 = tpu.iota {dimensions = array<i32: 1>} : vector<16x128xi32>
    %2 = vector.broadcast %0 : vector<16x1xi32> to vector<16x128xi32>
    %3 = arith.cmpi eq, %1, %2 : vector<16x128xi32>
    %4 = arith.extui %3 : vector<16x128xi1> to vector<16x128xi32>
    %5 = arith.sitofp %4 : vector<16x128xi32> to vector<16x128xf32>
    %6 = arith.truncf %5 : vector<16x128xf32> to vector<16x128xbf16>
    %c0_1 = arith.constant 0 : index
    %c0_2 = arith.constant 0 : index
    %7 = vector.load %arg2[%c0_1, %c0_2] : memref<128x128xbf16, #tpu.memory_space<vmem>>, vector<128x128xbf16>
    %cst = arith.constant dense<0.000000e+00> : vector<16x128xf32>
    %8 = tpu.matmul %6, %7, %cst {dimension_numbers = #tpu.dot_dimension_numbers<[1], [0], [0], [1], [0, 0, 1, 1], [], []>} : vector<16x128xbf16>, vector<128x128xbf16>, vector<16x128xf32> -> vector<16x128xf32>
    %c0_3 = arith.constant 0 : index
    %c0_4 = arith.constant 0 : index
    %9 = vector.load %arg3[%c0_3, %c0_4] : memref<128x128xbf16, #tpu.memory_space<vmem>>, vector<128x128xbf16>
    %cst_5 = arith.constant dense<0.000000e+00> : vector<16x128xf32>
    %10 = tpu.matmul %6, %9, %cst_5 {dimension_numbers = #tpu.dot_dimension_numbers<[1], [0], [0], [1], [0, 0, 1, 1], [], []>} : vector<16x128xbf16>, vector<128x128xbf16>, vector<16x128xf32> -> vector<16x128xf32>
    %11 = arith.addf %8, %10 : vector<16x128xf32>
    %c0_6 = arith.constant 0 : index
    %c0_7 = arith.constant 0 : index
    %12 = vector.load %arg4[%c0_6, %c0_7] : memref<16x128xf32, #tpu.memory_space<vmem>>, vector<16x128xf32>
    tpu.vector_store %arg4[%c0_6, %c0_7], %11 {strides = array<i32>} : memref<16x128xf32, #tpu.memory_space<vmem>>, vector<16x128xf32>,
    return
  }
  func.func @transform_0(%arg0: i32) -> (i32, i32) {
    %c0_i32 = arith.constant 0 : i32
    %c0_i32_0 = arith.constant 0 : i32
    return %arg0, %c0_i32 : i32, i32
  }
  func.func @transform_1(%arg0: i32) -> (i32, i32) {
    %c0_i32 = arith.constant 0 : i32
    %c0_i32_0 = arith.constant 0 : i32
    %c0_i32_1 = arith.constant 0 : i32
    return %c0_i32, %c0_i32_0 : i32, i32
  }
  func.func @transform_2(%arg0: i32) -> (i32, i32) {
    %c0_i32 = arith.constant 0 : i32
    %c0_i32_0 = arith.constant 0 : i32
    %c0_i32_1 = arith.constant 0 : i32
    return %c0_i32, %c0_i32_0 : i32, i32
  }
  func.func @transform_3(%arg0: i32) -> (i32, i32) {
    %c0_i32 = arith.constant 0 : i32
    %c0_i32_0 = arith.constant 0 : i32
    return %arg0, %c0_i32 : i32, i32
  }
}

</mosaic_0001>

<llo_original>
// kernel: tpu_custom_call.1
$region0: #{tpu_custom_call.1}
  #allocation0 [shape = 'u32[]', space=smem, size = 0x4, offset = 0x4, fixed_abs, tag = 'smem constant byte address 0x4 - core index']
  #allocation1 [shape = 'u32[144,128]{1,0:T(1,128)}', space=vmem, size = 0x12000, scoped, tag = 'internal scratch']
  %s0 = inlined_call_operand.vmem [shape: s32[16,1], index: 0, kind: input, shape index: {}]
  %s1 = inlined_call_operand.hbm [shape: bf16[128,128], index: 1, kind: input, shape index: {}]
  %s2 = inlined_call_operand.hbm [shape: bf16[128,128], index: 2, kind: input, shape index: {}]
  %s3 = inlined_call_operand.hbm [shape: f32[16,128], index: 3, kind: output, shape index: {}]
  %s4 = sld [smem:[#allocation0]]
  $region30: #{tpu_custom_call.1} parent=0
    _
  %s6 = ssub.s32 1, %s4
  %s7 = scalar_select 0, %s6, %s4
  $region1: #{tpu_custom_call.1} parent=0
    #allocation2 [shape = 'u8[32768]{0}', space=vmem, size = 0x8000, scoped, tag = 'input window, operand 1, single buffered']
    #allocation3 [shape = 's32[1]{0}', space=sflag, size = 0x4, scoped, tag = 'scoped memory for tpu_custom_call.1']
    #allocation4 [shape = 's32[1]{0}', space=sflag, size = 0x4, scoped, tag = 'scoped memory for tpu_custom_call.1']
    #allocation5 [shape = 'u8[32768]{0}', space=vmem, size = 0x8000, scoped, tag = 'input window, operand 2, single buffered']
    #allocation6 [shape = 's32[1]{0}', space=sflag, size = 0x4, scoped, tag = 'scoped memory for tpu_custom_call.1']
    #allocation7 [shape = 'u8[8192]{0}', space=vmem, size = 0x2000, scoped, tag = 'output window, operand 0, single buffered']
    %8 = vsyncpa [#allocation3], 0
    %9 = vsyncpa [#allocation6], 0
    %10 = vsyncpa [#allocation4], 0
    // Predicated region
    $region2: #{tpu_custom_call.1} parent=1 // pred_check
      _
    $region3: #{tpu_custom_call.1} parent=1 // pred_check_branch
      %12 = sbr.rel (0) target = $region5
    $region4: #{tpu_custom_call.1} parent=1 // pred_region
      _
    $region5: #{tpu_custom_call.1} parent=1 // pred_fallthru
      _
    // Predicated region
    $region6: #{tpu_custom_call.1} parent=1 // pred_check
      _
    $region7: #{tpu_custom_call.1} parent=1 // pred_check_branch
      %14 = sbr.rel (0) target = $region9
    $region8: #{tpu_custom_call.1} parent=1 // pred_region
      %s16 = ssub.s32 1024, 1024
      %17 = vsyncadd [#allocation3], %s16
      %s18 = sshll.u32 [#allocation2], 4
      %s19 = int_to_ptr.vmem [resolvable:$true] %s18
      %24 = dma.hbm_to_vmem [thread:$0]  %s1, 1024, %s19, [#allocation3], 64, 64, 4
    $region9: #{tpu_custom_call.1} parent=1 // pred_fallthru
      _
    // Predicated region
    $region10: #{tpu_custom_call.1} parent=1 // pred_check
      _
    $region11: #{tpu_custom_call.1} parent=1 // pred_check_branch
      %26 = sbr.rel (0) target = $region13
    $region12: #{tpu_custom_call.1} parent=1 // pred_region
      %s28 = ssub.s32 1024, 1024
      %29 = vsyncadd [#allocation6], %s28
      %s30 = sshll.u32 [#allocation5], 4
      %s31 = int_to_ptr.vmem [resolvable:$true] %s30
      %36 = dma.hbm_to_vmem [thread:$0]  %s2, 1024, %s31, [#allocation6], 64, 64, 4
    $region13: #{tpu_custom_call.1} parent=1 // pred_fallthru
      _
    // Predicated region
    $region14: #{tpu_custom_call.1} parent=1 // pred_check
      _
    $region15: #{tpu_custom_call.1} parent=1 // pred_check_branch
      %38 = sbr.rel (0) target = $region17
    $region16: #{tpu_custom_call.1} parent=1 // pred_region
      %39 = dma.done [#allocation3], 1024
    $region17: #{tpu_custom_call.1} parent=1 // pred_fallthru
      _
    // Predicated region
    $region18: #{tpu_custom_call.1} parent=1 // pred_check
      _
    $region19: #{tpu_custom_call.1} parent=1 // pred_check_branch
      %41 = sbr.rel (0) target = $region21
    $region20: #{tpu_custom_call.1} parent=1 // pred_region
      %42 = dma.done [#allocation6], 1024
    $region21: #{tpu_custom_call.1} parent=1 // pred_fallthru
      _
    %v44 = vld [vmem:[%s0] sm:$0xff]
    %v45 = vld [vmem:[%s0 + $0x8] sm:$0xff]
    %v46 = vlaneseq
    %v47 = vand.u32 %v46, 127
    %48 = vset.pattern.permute.xlu0 0
    %49 = vperm.xlu0 %48, %v44
    %v50 = vpop.permute.xlu0 %49
    %51 = vset.pattern.permute.xlu0 0
    %52 = vperm.xlu0 %51, %v45
    %v53 = vpop.permute.xlu0 %52
    %vm54 = vcmp.eq.s32.totalorder %v47, %v50
    %vm55 = vcmp.eq.s32.totalorder %v47, %v53
    %v56 = vsel %vm54, 1, 0
    %v57 = vsel %vm55, 1, 0
    %v58 = vcvt.s32.f32 %v56
    %v59 = vcvt.s32.f32 %v57
    %v60 = vpack.c.bf16 %v59, %v58
    %v61 = vld [vmem:[#allocation2] sm:$0xf]
    %v62 = vld [vmem:[#allocation2 + $0x4] sm:$0xf]
    %v63 = vld [vmem:[#allocation2 + $0x8] sm:$0xf]
    %v64 = vld [vmem:[#allocation2 + $0xc] sm:$0xf]
    %v65 = vld [vmem:[#allocation2 + $0x10] sm:$0xf]
    %v66 = vld [vmem:[#allocation2 + $0x14] sm:$0xf]
    %v67 = vld [vmem:[#allocation2 + $0x18] sm:$0xf]
    %v68 = vld [vmem:[#allocation2 + $0x1c] sm:$0xf]
    %v69 = vld [vmem:[#allocation2 + $0x20] sm:$0xf]
    %v70 = vld [vmem:[#allocation2 + $0x24] sm:$0xf]
    %v71 = vld [vmem:[#allocation2 + $0x28] sm:$0xf]
    %v72 = vld [vmem:[#allocation2 + $0x2c] sm:$0xf]
    %v73 = vld [vmem:[#allocation2 + $0x30] sm:$0xf]
    %v74 = vld [vmem:[#allocation2 + $0x34] sm:$0xf]
    %v75 = vld [vmem:[#allocation2 + $0x38] sm:$0xf]
    %v76 = vld [vmem:[#allocation2 + $0x3c] sm:$0xf]
    %v77 = vld [vmem:[#allocation5] sm:$0xf]
    %v78 = vld [vmem:[#allocation5 + $0x4] sm:$0xf]
    %v79 = vld [vmem:[#allocation5 + $0x8] sm:$0xf]
    %v80 = vld [vmem:[#allocation5 + $0xc] sm:$0xf]
    %v81 = vld [vmem:[#allocation5 + $0x10] sm:$0xf]
    %v82 = vld [vmem:[#allocation5 + $0x14] sm:$0xf]
    %v83 = vld [vmem:[#allocation5 + $0x18] sm:$0xf]
    %v84 = vld [vmem:[#allocation5 + $0x1c] sm:$0xf]
    %v85 = vld [vmem:[#allocation5 + $0x20] sm:$0xf]
    %v86 = vld [vmem:[#allocation5 + $0x24] sm:$0xf]
    %v87 = vld [vmem:[#allocation5 + $0x28] sm:$0xf]
    %v88 = vld [vmem:[#allocation5 + $0x2c] sm:$0xf]
    %v89 = vld [vmem:[#allocation5 + $0x30] sm:$0xf]
    %v90 = vld [vmem:[#allocation5 + $0x34] sm:$0xf]
    %v91 = vld [vmem:[#allocation5 + $0x38] sm:$0xf]
    %v92 = vld [vmem:[#allocation5 + $0x3c] sm:$0xf]
    %v109 = vunpack.c.l.b16 %v77
    %v110 = vunpack.c.l.b16 %v78
    %v111 = vunpack.c.l.b16 %v79
    %v112 = vunpack.c.l.b16 %v80
    %v113 = vunpack.c.l.b16 %v81
    %v114 = vunpack.c.l.b16 %v82
    %v115 = vunpack.c.l.b16 %v83
    %v116 = vunpack.c.l.b16 %v84
    %v117 = vunpack.c.l.b16 %v85
    %v118 = vunpack.c.l.b16 %v86
    %v119 = vunpack.c.l.b16 %v87
    %v120 = vunpack.c.l.b16 %v88
    %v121 = vunpack.c.l.b16 %v89
    %v122 = vunpack.c.l.b16 %v90
    %v123 = vunpack.c.l.b16 %v91
    %v124 = vunpack.c.l.b16 %v92
    %v125 = vpack.c.b16 %v110, %v109
    %v126 = vpack.c.b16 %v112, %v111
    %v127 = vpack.c.b16 %v114, %v113
    %v128 = vpack.c.b16 %v116, %v115
    %v129 = vpack.c.b16 %v118, %v117
    %v130 = vpack.c.b16 %v120, %v119
    %v131 = vpack.c.b16 %v122, %v121
    %v132 = vpack.c.b16 %v124, %v123
    %141 = vmatprep.subr.bf16.mxu0 0
    %142 = vmatpush1.bf16.msra.mxu0 %v132
    %143 = vmatprep.subr.bf16.mxu0 0
    %144 = vmatpush1.bf16.msra.mxu0 %v131
    %145 = vmatprep.subr.bf16.mxu0 0
    %146 = vmatpush1.bf16.msra.mxu0 %v130
    %147 = vmatprep.subr.bf16.mxu0 0
    %148 = vmatpush1.bf16.msra.mxu0 %v129
    %149 = vmatprep.subr.bf16.mxu0 0
    %150 = vmatpush1.bf16.msra.mxu0 %v128
    %151 = vmatprep.subr.bf16.mxu0 0
    %152 = vmatpush1.bf16.msra.mxu0 %v127
    %153 = vmatprep.subr.bf16.mxu0 0
    %154 = vmatpush1.bf16.msra.mxu0 %v126
    %155 = vmatprep.subr.bf16.mxu0 0
    %156 = vmatpush1.bf16.msra.mxu0 %v125
    %157 = vmatprep.subr.bf16.mxu0 0
    %158 = vmatpush2.bf16.msra.mxu0 0
    %159 = vmatprep.subr.bf16.mxu0 0
    %160 = vmatpush2.bf16.msra.mxu0 0
    %161 = vmatprep.subr.bf16.mxu0 0
    %162 = vmatpush2.bf16.msra.mxu0 0
    %163 = vmatprep.subr.bf16.mxu0 0
    %164 = vmatpush2.bf16.msra.mxu0 0
    %165 = vmatprep.subr.bf16.mxu0 0
    %166 = vmatpush2.bf16.msra.mxu0 0
    %167 = vmatprep.subr.bf16.mxu0 0
    %168 = vmatpush2.bf16.msra.mxu0 0
    %169 = vmatprep.subr.bf16.mxu0 0
    %170 = vmatpush2.bf16.msra.mxu0 0
    %171 = vmatprep.subr.bf16.mxu0 0
    %172 = vmatpush2.bf16.msra.mxu0 0
    %173 = vmatprep.mubr.bf16.mxu0 0
    %174 = vmatmul.mubr.bf16.gmra.mxu0 %v60
    %v175 = vpop.f32.mrf.mxu0
    %v176 = vadd.f32 0.0, %v175
    %v177 = vpop.f32.mrf.mxu0
    %v178 = vpop.f32.mrf.mxu0
    %v179 = vadd.f32 0.0, %v178
    %v180 = vpop.f32.mrf.mxu0
    %181 = vdwg.mxu0
    %v198 = vunpack.c.l.b16 %v61
    %v199 = vunpack.c.l.b16 %v62
    %v200 = vunpack.c.l.b16 %v63
    %v201 = vunpack.c.l.b16 %v64
    %v202 = vunpack.c.l.b16 %v65
    %v203 = vunpack.c.l.b16 %v66
    %v204 = vunpack.c.l.b16 %v67
    %v205 = vunpack.c.l.b16 %v68
    %v206 = vunpack.c.l.b16 %v69
    %v207 = vunpack.c.l.b16 %v70
    %v208 = vunpack.c.l.b16 %v71
    %v209 = vunpack.c.l.b16 %v72
    %v210 = vunpack.c.l.b16 %v73
    %v211 = vunpack.c.l.b16 %v74
    %v212 = vunpack.c.l.b16 %v75
    %v213 = vunpack.c.l.b16 %v76
    %v214 = vpack.c.b16 %v199, %v198
    %v215 = vpack.c.b16 %v201, %v200
    %v216 = vpack.c.b16 %v203, %v202
    %v217 = vpack.c.b16 %v205, %v204
    %v218 = vpack.c.b16 %v207, %v206
    %v219 = vpack.c.b16 %v209, %v208
    %v220 = vpack.c.b16 %v211, %v210
    %v221 = vpack.c.b16 %v213, %v212
    %230 = vmatprep.subr.bf16.mxu0 0
    %231 = vmatpush1.bf16.msra.mxu0 %v221
    %232 = vmatprep.subr.bf16.mxu0 0
    %233 = vmatpush1.bf16.msra.mxu0 %v220
    %234 = vmatprep.subr.bf16.mxu0 0
    %235 = vmatpush1.bf16.msra.mxu0 %v219
    %236 = vmatprep.subr.bf16.mxu0 0
    %237 = vmatpush1.bf16.msra.mxu0 %v218
    %238 = vmatprep.subr.bf16.mxu0 0
    %239 = vmatpush1.bf16.msra.mxu0 %v217
    %240 = vmatprep.subr.bf16.mxu0 0
    %241 = vmatpush1.bf16.msra.mxu0 %v216
    %242 = vmatprep.subr.bf16.mxu0 0
    %243 = vmatpush1.bf16.msra.mxu0 %v215
    %244 = vmatprep.subr.bf16.mxu0 0
    %245 = vmatpush1.bf16.msra.mxu0 %v214
    %246 = vmatprep.subr.bf16.mxu0 0
    %247 = vmatpush2.bf16.msra.mxu0 0
    %248 = vmatprep.subr.bf16.mxu0 0
    %249 = vmatpush2.bf16.msra.mxu0 0
    %250 = vmatprep.subr.bf16.mxu0 0
    %251 = vmatpush2.bf16.msra.mxu0 0
    %252 = vmatprep.subr.bf16.mxu0 0
    %253 = vmatpush2.bf16.msra.mxu0 0
    %254 = vmatprep.subr.bf16.mxu0 0
    %255 = vmatpush2.bf16.msra.mxu0 0
    %256 = vmatprep.subr.bf16.mxu0 0
    %257 = vmatpush2.bf16.msra.mxu0 0
    %258 = vmatprep.subr.bf16.mxu0 0
    %259 = vmatpush2.bf16.msra.mxu0 0
    %260 = vmatprep.subr.bf16.mxu0 0
    %261 = vmatpush2.bf16.msra.mxu0 0
    %262 = vmatprep.mubr.bf16.mxu0 0
    %263 = vmatmul.mubr.bf16.gmra.mxu0 %v60
    %v264 = vpop.f32.mrf.mxu0
    %v265 = vadd.f32 %v176, %v264
    %v266 = vpop.f32.mrf.mxu0
    %v267 = vpop.f32.mrf.mxu0
    %v268 = vadd.f32 %v179, %v267
    %v269 = vpop.f32.mrf.mxu0
    %270 = vdwg.mxu0
    %271 = vst [vmem:[#allocation7] sm:$0xff] %v265
    %272 = vst [vmem:[#allocation7 + $0x8] sm:$0xff] %v268
    // Predicated region
    $region22: #{tpu_custom_call.1} parent=1 // pred_check
      _
    $region23: #{tpu_custom_call.1} parent=1 // pred_check_branch
      %274 = sbr.rel (0) target = $region25
    $region24: #{tpu_custom_call.1} parent=1 // pred_region
      %s276 = ssub.s32 256, 256
      %277 = vsyncadd [#allocation4], %s276
      %s278 = sshll.u32 [#allocation7], 4
      %s279 = int_to_ptr.vmem [resolvable:$true] %s278
      %284 = dma.vmem_to_hbm [thread:$0]  %s279, 256, %s3, [#allocation4], 128, 128, 8
    $region25: #{tpu_custom_call.1} parent=1 // pred_fallthru
      _
    // Predicated region
    $region26: #{tpu_custom_call.1} parent=1 // pred_check
      _
    $region27: #{tpu_custom_call.1} parent=1 // pred_check_branch
      %286 = sbr.rel (0) target = $region29
    $region28: #{tpu_custom_call.1} parent=1 // pred_region
      %287 = dma.done [#allocation4], 256
    $region29: #{tpu_custom_call.1} parent=1 // pred_fallthru
      _
    %288 = vsyncpa [#allocation3], 1
    %289 = vsyncpa [#allocation6], 1
    %290 = vsyncpa [#allocation4], 1

</llo_original>
